<compile_context>
chip_gen: v7x
topology: tpu7x:2x2x1
jax: 0.10.0
libtpu: 0.0.40
codegen_flags: <defaults>
</compile_context>

<pallas_src>
import functools

import jax
import jax.numpy as jnp
from jax.experimental import pallas as pl
from jax.experimental.pallas import tpu as pltpu

LANE = 128             # lane width: last-dim alignment for dense stores / MXU
SUBLANE = 8            # second-to-last dim alignment
MAX_BATCH_TILE = 1024  # rows per grid step: big enough to amortize the
                       # ~0.35 us per-step overhead, ~2-3 MiB per-tile VMEM


def _round_up(x, m):
    return ((x + m - 1) // m) * m


def _default_tail_dtype():
    """bf16 bias+ReLU tail on chips with a bf16 VPU (v6e/v7x); f32 elsewhere."""
    try:
        kind = jax.devices()[0].device_kind.lower()
    except Exception:
        return jnp.float32
    return jnp.bfloat16 if ("v6" in kind or "v7" in kind) else jnp.float32


def _mlp_kernel(x_ref, w1_ref, b1_ref, w2_ref, b2_ref, out_ref, xpad_ref, *,
                tail_dtype):
    in_size = x_ref.shape[1]
    # Zero-extend the (tb, in_size) f32 input tile to a lane-aligned (tb, 128)
    # contraction dim inside VMEM.  Zeroed every step: with the "parallel"
    # batch axis the grid steps may be split across TensorCores, so a
    # "zero once at step 0" trick would be wrong.
    xpad_ref[...] = jnp.zeros_like(xpad_ref)
    xpad_ref[:, :in_size] = x_ref[...]
    xb = xpad_ref[...].astype(jnp.bfloat16)

    # linear1: bf16 operands on the MXU, f32 accumulation; bias + ReLU tail in
    # tail_dtype (bf16 on v6e/v7x, f32 on v5e — no bf16 VPU there).
    acc = jnp.dot(xb, w1_ref[...], preferred_element_type=jnp.float32)
    h = jnp.maximum(acc.astype(tail_dtype) + b1_ref[...].astype(tail_dtype), 0)

    # linear2: bf16 operands, f32 accumulation; f32 bias + lane-dense store.
    o = jnp.dot(h.astype(jnp.bfloat16), w2_ref[...],
                preferred_element_type=jnp.float32)
    out_ref[...] = (o + b2_ref[...]).astype(out_ref.dtype)


def _choose_batch_tile(batch, batch_tile):
    """Rows per grid step: a multiple of 8, as large as possible, but split
    into >=2 grid steps when feasible so v7x's second TensorCore gets work."""
    bt = _round_up(max(int(batch_tile), SUBLANE), SUBLANE)
    b8 = _round_up(batch, SUBLANE)
    tb = min(bt, b8)
    if pl.cdiv(batch, tb) == 1 and b8 >= 2 * SUBLANE:
        tb = min(tb, _round_up(pl.cdiv(b8, 2), SUBLANE))
    return tb


def _forward_padded(x, w1p, b1p, w2p, b2p, tb, tail_dtype):
    batch, in_size = x.shape
    ipad, hpad = w1p.shape
    opad = w2p.shape[1]
    grid = (pl.cdiv(batch, tb),)

    # Advisory cost estimate for XLA scheduling around the custom call.
    flops = 2 * batch * (ipad * hpad + hpad * opad)
    bytes_accessed = (batch * in_size * 4                 # x (f32, unpadded)
                      + (ipad * hpad + hpad * opad) * 2   # weights (bf16)
                      + (hpad + opad) * 4                 # biases (f32)
                      + batch * opad * 4)                 # out (f32)

    # Honest VMEM footprint: resident weights/biases + double-buffered x/out
    # tiles + in-kernel padded-x scratch + hidden intermediates, plus headroom.
    resident = ((ipad * hpad + hpad * opad) * 2 + (hpad + opad) * 4
                + 2 * tb * in_size * 4        # x tiles (double-buffered)
                + 2 * tb * opad * 4           # out tiles (double-buffered)
                + tb * ipad * 4               # padded-x scratch
                + 2 * tb * hpad * 4)          # f32 acc + tail intermediate
    vmem_limit = int(min(64 * 1024 * 1024, 2 * resident + (8 << 20)))

    kernel = functools.partial(_mlp_kernel, tail_dtype=tail_dtype)
    return pl.pallas_call(
        kernel,
        out_shape=jax.ShapeDtypeStruct((batch, opad), jnp.float32),
        grid_spec=pltpu.PrefetchScalarGridSpec(
            num_scalar_prefetch=0,
            grid=grid,
            in_specs=[
                pl.BlockSpec((tb, in_size), lambda i: (i, 0)),  # x tile (pipelined)
                pl.BlockSpec((ipad, hpad), lambda i: (0, 0)),   # w1: VMEM-resident
                pl.BlockSpec((1, hpad), lambda i: (0, 0)),      # b1: VMEM-resident
                pl.BlockSpec((hpad, opad), lambda i: (0, 0)),   # w2: VMEM-resident
                pl.BlockSpec((1, opad), lambda i: (0, 0)),      # b2: VMEM-resident
            ],
            out_specs=pl.BlockSpec((tb, opad), lambda i: (i, 0)),
            scratch_shapes=[pltpu.VMEM((tb, ipad), jnp.float32)],  # padded x
        ),
        compiler_params=pltpu.CompilerParams(
            # Batch tiles are independent -> megacore-shardable (2 TCs on v7x).
            dimension_semantics=("parallel",),
            vmem_limit_bytes=vmem_limit,
        ),
        cost_estimate=pl.CostEstimate(
            flops=flops, transcendentals=0, bytes_accessed=int(bytes_accessed)),
    )(x, w1p, b1p, w2p, b2p)


@functools.partial(jax.jit,
                   static_argnames=("batch_tile", "tail_dtype", "out_size"))
def _forward_core(x, w1p, b1p, w2p, b2p, *, batch_tile, tail_dtype, out_size):
    tb = _choose_batch_tile(x.shape[0], batch_tile)
    out = _forward_padded(x, w1p, b1p, w2p, b2p, tb, tail_dtype)
    if out_size is not None:
        out = out[:, :out_size]
    return out


def linear_qnet_forward_padded(x, w1p, b1p, w2p, b2p, *,
                               batch_tile=MAX_BATCH_TILE, tail_dtype=None):
    """Returns the (B, 128) lane-padded f32 output (no slice copy).  Prefer
    this when the consumer indexes the logical Q-value columns directly."""
    if tail_dtype is None:
        tail_dtype = _default_tail_dtype()
    return _forward_core(x, w1p, b1p, w2p, b2p, batch_tile=batch_tile,
                         tail_dtype=tail_dtype, out_size=None)


def linear_qnet_forward(x, w1p, b1p, w2p, b2p, *, out_size,
                        batch_tile=MAX_BATCH_TILE, tail_dtype=None):
    """PyTorch-shaped API: x (B, input_size) -> (B, out_size) f32."""
    if tail_dtype is None:
        tail_dtype = _default_tail_dtype()
    return _forward_core(x, w1p, b1p, w2p, b2p, batch_tile=batch_tile,
                         tail_dtype=tail_dtype, out_size=out_size)


def init_params(key, input_size, hidden_size, output_size, dtype=jnp.float32):
    """PyTorch-style nn.Linear init (uniform +/- 1/sqrt(fan_in)); weights
    stored as (in, out) at their logical shapes."""
    k1, k2, k3, k4 = jax.random.split(key, 4)
    bound1 = 1.0 / (input_size ** 0.5)
    bound2 = 1.0 / (hidden_size ** 0.5)
    w1 = jax.random.uniform(k1, (input_size, hidden_size), dtype, -bound1, bound1)
    b1 = jax.random.uniform(k2, (1, hidden_size), dtype, -bound1, bound1)
    w2 = jax.random.uniform(k3, (hidden_size, output_size), dtype, -bound2, bound2)
    b2 = jax.random.uniform(k4, (1, output_size), dtype, -bound2, bound2)
    return w1, b1, w2, b2


def prepare_params(w1, b1, w2, b2, lane=LANE):
    """Zero-pad params to lane-aligned shapes ONCE (not per call).
    Weights -> bf16 for the MXU; biases stay f32 (cast in-kernel if needed)."""
    i, h = w1.shape
    _, o = w2.shape
    ip, hp, op = _round_up(i, lane), _round_up(h, lane), _round_up(o, lane)
    w1p = jnp.zeros((ip, hp), jnp.bfloat16).at[:i, :h].set(w1.astype(jnp.bfloat16))
    b1p = jnp.zeros((1, hp), jnp.float32).at[:, :h].set(
        b1.reshape(1, -1).astype(jnp.float32))
    w2p = jnp.zeros((hp, op), jnp.bfloat16).at[:h, :o].set(w2.astype(jnp.bfloat16))
    b2p = jnp.zeros((1, op), jnp.float32).at[:, :o].set(
        b2.reshape(1, -1).astype(jnp.float32))
    return w1p, b1p, w2p, b2p


def _reference(x, w1, b1, w2, b2, tail_dtype):
    """Plain-JAX reference mirroring the kernel's mixed-precision choices."""
    hi = jax.lax.Precision.HIGHEST
    f32 = jnp.float32
    xq = x.astype(jnp.bfloat16).astype(f32)
    w1q = w1.astype(jnp.bfloat16).astype(f32)
    w2q = w2.astype(jnp.bfloat16).astype(f32)
    acc = jnp.dot(xq, w1q, precision=hi)
    if tail_dtype == jnp.bfloat16:
        h = jnp.maximum(acc.astype(tail_dtype)
                        + b1.reshape(1, -1).astype(tail_dtype), 0)
    else:
        h = jnp.maximum(acc + b1.reshape(1, -1), 0.0)
    hq = h.astype(jnp.bfloat16).astype(f32)
    return jnp.dot(hq, w2q, precision=hi) + b2.reshape(1, -1)


if __name__ == "__main__":
    # Replay-minibatch-sized problem (classic snake Q-net dims: 11 -> 32 -> 3).
    batch, input_size, hidden_size, output_size = 256, 11, 32, 3

    key = jax.random.PRNGKey(0)
    kx, kp = jax.random.split(key)
    x = jax.random.normal(kx, (batch, input_size), jnp.float32)

    w1, b1, w2, b2 = init_params(kp, input_size, hidden_size, output_size)
    w1p, b1p, w2p, b2p = prepare_params(w1, b1, w2, b2)   # padded once

    tail_dtype = _default_tail_dtype()
    out = linear_qnet_forward(x, w1p, b1p, w2p, b2p, out_size=output_size,
                              tail_dtype=tail_dtype)
    jax.block_until_ready(out)

    ref = _reference(x, w1, b1, w2, b2, tail_dtype)
    assert out.shape == (batch, output_size)
    assert jnp.allclose(out, ref, atol=2e-2, rtol=2e-2), \
        float(jnp.max(jnp.abs(out - ref)))

    print("KERNEL_OK")
</pallas_src>

<mosaic_0001>
module attributes {stable_mosaic.version = 11 : i64} {
  func.func @_mlp_kernel(%arg0: i32, %arg1: memref<128x11xf32, #tpu.memory_space<vmem>>, %arg2: memref<128x128xbf16, #tpu.memory_space<vmem>>, %arg3: memref<1x128xf32, #tpu.memory_space<vmem>>, %arg4: memref<128x128xbf16, #tpu.memory_space<vmem>>, %arg5: memref<1x128xf32, #tpu.memory_space<vmem>>, %arg6: memref<128x128xf32, #tpu.memory_space<vmem>>, %arg7: memref<128x128xf32, #tpu.memory_space<vmem>>) attributes {dimension_semantics = [#tpu.dimension_semantics<parallel>], iteration_bounds = array<i64: 2>, scalar_prefetch = 0 : i64, scratch_operands = 1 : i64, tpu.core_type = #tpu.core_type<tc>, window_params = [{transform_indices = @transform_0, window_bounds = array<i64: 128, 11>}, {pipeline_mode = #tpu.pipeline_mode<synchronous>, transform_indices = @transform_1, window_bounds = array<i64: 128, 128>}, {pipeline_mode = #tpu.pipeline_mode<synchronous>, transform_indices = @transform_2, window_bounds = array<i64: 1, 128>}, {pipeline_mode = #tpu.pipeline_mode<synchronous>, transform_indices = @transform_3, window_bounds = array<i64: 128, 128>}, {pipeline_mode = #tpu.pipeline_mode<synchronous>, transform_indices = @transform_4, window_bounds = array<i64: 1, 128>}, {transform_indices = @transform_5, window_bounds = array<i64: 128, 128>}]} {
    %cst = arith.constant 0.000000e+00 : f32
    %0 = vector.broadcast %cst : f32 to vector<128x128xf32>
    %c0 = arith.constant 0 : index
    %c0_0 = arith.constant 0 : index
    %1 = vector.load %arg7[%c0, %c0_0] : memref<128x128xf32, #tpu.memory_space<vmem>>, vector<128x128xf32>
    tpu.vector_store %arg7[%c0, %c0_0], %0 {strides = array<i32>} : memref<128x128xf32, #tpu.memory_space<vmem>>, vector<128x128xf32>,
    %c0_1 = arith.constant 0 : index
    %c0_2 = arith.constant 0 : index
    %2 = vector.load %arg1[%c0_1, %c0_2] : memref<128x11xf32, #tpu.memory_space<vmem>>, vector<128x11xf32>
    %c0_3 = arith.constant 0 : index
    %c0_4 = arith.constant 0 : index
    %3 = vector.load %arg7[%c0_3, %c0_4] : memref<128x128xf32, #tpu.memory_space<vmem>>, vector<128x11xf32>
    tpu.vector_store %arg7[%c0_3, %c0_4], %2 {strides = array<i32>} : memref<128x128xf32, #tpu.memory_space<vmem>>, vector<128x11xf32>,
    %c0_5 = arith.constant 0 : index
    %c0_6 = arith.constant 0 : index
    %4 = vector.load %arg7[%c0_5, %c0_6] : memref<128x128xf32, #tpu.memory_space<vmem>>, vector<128x128xf32>
    %5 = arith.truncf %4 : vector<128x128xf32> to vector<128x128xbf16>
    %c0_7 = arith.constant 0 : index
    %c0_8 = arith.constant 0 : index
    %6 = vector.load %arg2[%c0_7, %c0_8] : memref<128x128xbf16, #tpu.memory_space<vmem>>, vector<128x128xbf16>
    %cst_9 = arith.constant dense<0.000000e+00> : vector<128x128xf32>
    %7 = tpu.matmul %5, %6, %cst_9 {dimension_numbers = #tpu.dot_dimension_numbers<[1], [0], [0], [1], [0, 0, 1, 1], [], []>} : vector<128x128xbf16>, vector<128x128xbf16>, vector<128x128xf32> -> vector<128x128xf32>
    %c0_10 = arith.constant 0 : index
    %c0_11 = arith.constant 0 : index
    %8 = vector.load %arg3[%c0_10, %c0_11] : memref<1x128xf32, #tpu.memory_space<vmem>>, vector<1x128xf32>
    %9 = vector.broadcast %8 : vector<1x128xf32> to vector<128x128xf32>
    %10 = arith.addf %7, %9 : vector<128x128xf32>
    %cst_12 = arith.constant 0.000000e+00 : f32
    %11 = vector.broadcast %cst_12 : f32 to vector<128x128xf32>
    %12 = arith.maximumf %10, %11 : vector<128x128xf32>
    %13 = arith.truncf %12 : vector<128x128xf32> to vector<128x128xbf16>
    %c0_13 = arith.constant 0 : index
    %c0_14 = arith.constant 0 : index
    %14 = vector.load %arg4[%c0_13, %c0_14] : memref<128x128xbf16, #tpu.memory_space<vmem>>, vector<128x128xbf16>
    %cst_15 = arith.constant dense<0.000000e+00> : vector<128x128xf32>
    %15 = tpu.matmul %13, %14, %cst_15 {dimension_numbers = #tpu.dot_dimension_numbers<[1], [0], [0], [1], [0, 0, 1, 1], [], []>} : vector<128x128xbf16>, vector<128x128xbf16>, vector<128x128xf32> -> vector<128x128xf32>
    %c0_16 = arith.constant 0 : index
    %c0_17 = arith.constant 0 : index
    %16 = vector.load %arg5[%c0_16, %c0_17] : memref<1x128xf32, #tpu.memory_space<vmem>>, vector<1x128xf32>
    %17 = vector.broadcast %16 : vector<1x128xf32> to vector<128x128xf32>
    %18 = arith.addf %15, %17 : vector<128x128xf32>
    %c0_18 = arith.constant 0 : index
    %c0_19 = arith.constant 0 : index
    %19 = vector.load %arg6[%c0_18, %c0_19] : memref<128x128xf32, #tpu.memory_space<vmem>>, vector<128x128xf32>
    tpu.vector_store %arg6[%c0_18, %c0_19], %18 {strides = array<i32>} : memref<128x128xf32, #tpu.memory_space<vmem>>, vector<128x128xf32>,
    return
  }
  func.func @transform_0(%arg0: i32) -> (i32, i32) {
    %c0_i32 = arith.constant 0 : i32
    %c0_i32_0 = arith.constant 0 : i32
    return %arg0, %c0_i32 : i32, i32
  }
  func.func @transform_1(%arg0: i32) -> (i32, i32) {
    %c0_i32 = arith.constant 0 : i32
    %c0_i32_0 = arith.constant 0 : i32
    %c0_i32_1 = arith.constant 0 : i32
    return %c0_i32, %c0_i32_0 : i32, i32
  }
  func.func @transform_2(%arg0: i32) -> (i32, i32) {
    %c0_i32 = arith.constant 0 : i32
    %c0_i32_0 = arith.constant 0 : i32
    %c0_i32_1 = arith.constant 0 : i32
    return %c0_i32, %c0_i32_0 : i32, i32
  }
  func.func @transform_3(%arg0: i32) -> (i32, i32) {
    %c0_i32 = arith.constant 0 : i32
    %c0_i32_0 = arith.constant 0 : i32
    %c0_i32_1 = arith.constant 0 : i32
    return %c0_i32, %c0_i32_0 : i32, i32
  }
  func.func @transform_4(%arg0: i32) -> (i32, i32) {
    %c0_i32 = arith.constant 0 : i32
    %c0_i32_0 = arith.constant 0 : i32
    %c0_i32_1 = arith.constant 0 : i32
    return %c0_i32, %c0_i32_0 : i32, i32
  }
  func.func @transform_5(%arg0: i32) -> (i32, i32) {
    %c0_i32 = arith.constant 0 : i32
    %c0_i32_0 = arith.constant 0 : i32
    return %arg0, %c0_i32 : i32, i32
  }
}

</mosaic_0001>

<llo_original>
// kernel: _forward_core.1
$region0: #{_forward_core.1}
  #allocation0 [shape = 'u32[]', space=smem, size = 0x4, offset = 0x4, fixed_abs, tag = 'smem constant byte address 0x4 - core index']
  #allocation1 [shape = 'u32[144,128]{1,0:T(1,128)}', space=vmem, size = 0x12000, scoped, tag = 'internal scratch']
  #allocation2 [shape = 'f32[128,128]{1,0:T(8,128)}', space=vmem, size = 0x10000, scoped, tag = 'scratch operand']
  %s0 = inlined_call_operand.vmem [shape: f32[256,11], index: 0, kind: input, shape index: {}]
  %s1 = inlined_call_operand.vmem [shape: bf16[128,128], index: 1, kind: input, shape index: {}]
  %s2 = inlined_call_operand.vmem [shape: f32[1,128], index: 2, kind: input, shape index: {}]
  %s3 = inlined_call_operand.vmem [shape: bf16[128,128], index: 3, kind: input, shape index: {}]
  %s4 = inlined_call_operand.vmem [shape: f32[1,128], index: 4, kind: input, shape index: {}]
  %s5 = inlined_call_operand.vmem [shape: f32[256,128], index: 5, kind: output, shape index: {}]
  %s6 = sld [smem:[#allocation0]]
  $region53: #{_forward_core.1} parent=0
    _
  %s8 = ssub.s32 1, %s6
  %s9 = scalar_select 0, %s8, %s6
  loop: start=0, step=1, limit=4
  $region2: #{_forward_core.1} parent=0 // loop_pre_header
    _
  $region3: #{_forward_core.1} parent=0 // loop_header
    %s11 = sphi 0, %s15
    %p12 = scmp.ge.s32.totalorder %s11, 4
    %s21 = sphi 0, %s23
    %s24 = sphi 0, %s21
    %s25 = sphi 0, %s24
    %s41 = sphi 0, %s25
    %s45 = sphi 0, %s45
    %s47 = sphi 0, %s45
    %s48 = sphi 0, %s47
    %s62 = sphi 0, %s48
    %s66 = sphi 0, %s66
    %s68 = sphi 0, %s66
    %s69 = sphi 0, %s68
    %s83 = sphi 0, %s69
    %s87 = sphi 0, %s87
    %s89 = sphi 0, %s87
    %s90 = sphi 0, %s89
    %s104 = sphi 0, %s90
    %s108 = sphi 0, %s108
    %s110 = sphi 0, %s108
    %s111 = sphi 0, %s110
    %s125 = sphi 0, %s111
    %s131 = sphi 0, %s133
    %s134 = sphi 0, %s131
    %s135 = sphi 0, %s134
    %s151 = sphi 0, %s135
  $region4: #{_forward_core.1} parent=0 // loop_header_branch
    %14 = sbr.rel (%p12) target = $region8
  $region5: #{_forward_core.1} parent=0 // loop_body
    %s16 = ssub.s32 %s11, 1
    %s17 = ssub.s32 %s11, 2
    %s18 = sadd.s32 %s11, 1
    %s19 = ssub.s32 %s11, %s18
    %p20 = scmp.eq.s32.totalorder %s19, 0
    %s22 = sadd.s32 %s21, 1
    %s23 = scalar_select %p20, %s21, %s22
    %p26 = pneg %p20
    %p27 = scmp.eq.s32.totalorder %s11, 1
    %p28 = por %p26, %p27
    %p29 = scmp.ne.s32.totalorder %s21, %s24
    %p30 = scmp.eq.s32.totalorder %s11, 0
    %p31 = por %p29, %p30
    %p32 = scmp.ne.s32.totalorder %s21, %s24
    %p33 = scmp.eq.s32.totalorder %s16, 1
    %p34 = por %p32, %p33
    %p35 = scmp.ne.s32.totalorder %s24, %s25
    %p36 = scmp.eq.s32.totalorder %s16, 0
    %p37 = por %p35, %p36
    %p38 = scmp.ne.s32.totalorder %s24, %s25
    %p39 = scmp.eq.s32.totalorder %s17, 1
    %p40 = por %p38, %p39
    %p42 = scmp.ne.s32.totalorder %s25, %s41
    %p43 = scmp.eq.s32.totalorder %s17, 0
    %p44 = por %p42, %p43
    %s46 = sadd.s32 %s45, 1
    %p49 = scmp.eq.s32.totalorder %s11, 1
    %p50 = scmp.ne.s32.totalorder %s45, %s47
    %p51 = scmp.eq.s32.totalorder %s11, 0
    %p52 = por %p50, %p51
    %p53 = scmp.ne.s32.totalorder %s45, %s47
    %p54 = scmp.eq.s32.totalorder %s16, 1
    %p55 = por %p53, %p54
    %p56 = scmp.ne.s32.totalorder %s47, %s48
    %p57 = scmp.eq.s32.totalorder %s16, 0
    %p58 = por %p56, %p57
    %p59 = scmp.ne.s32.totalorder %s47, %s48
    %p60 = scmp.eq.s32.totalorder %s17, 1
    %p61 = por %p59, %p60
    %p63 = scmp.ne.s32.totalorder %s48, %s62
    %p64 = scmp.eq.s32.totalorder %s17, 0
    %p65 = por %p63, %p64
    %s67 = sadd.s32 %s66, 1
    %p70 = scmp.eq.s32.totalorder %s11, 1
    %p71 = scmp.ne.s32.totalorder %s66, %s68
    %p72 = scmp.eq.s32.totalorder %s11, 0
    %p73 = por %p71, %p72
    %p74 = scmp.ne.s32.totalorder %s66, %s68
    %p75 = scmp.eq.s32.totalorder %s16, 1
    %p76 = por %p74, %p75
    %p77 = scmp.ne.s32.totalorder %s68, %s69
    %p78 = scmp.eq.s32.totalorder %s16, 0
    %p79 = por %p77, %p78
    %p80 = scmp.ne.s32.totalorder %s68, %s69
    %p81 = scmp.eq.s32.totalorder %s17, 1
    %p82 = por %p80, %p81
    %p84 = scmp.ne.s32.totalorder %s69, %s83
    %p85 = scmp.eq.s32.totalorder %s17, 0
    %p86 = por %p84, %p85
    %s88 = sadd.s32 %s87, 1
    %p91 = scmp.eq.s32.totalorder %s11, 1
    %p92 = scmp.ne.s32.totalorder %s87, %s89
    %p93 = scmp.eq.s32.totalorder %s11, 0
    %p94 = por %p92, %p93
    %p95 = scmp.ne.s32.totalorder %s87, %s89
    %p96 = scmp.eq.s32.totalorder %s16, 1
    %p97 = por %p95, %p96
    %p98 = scmp.ne.s32.totalorder %s89, %s90
    %p99 = scmp.eq.s32.totalorder %s16, 0
    %p100 = por %p98, %p99
    %p101 = scmp.ne.s32.totalorder %s89, %s90
    %p102 = scmp.eq.s32.totalorder %s17, 1
    %p103 = por %p101, %p102
    %p105 = scmp.ne.s32.totalorder %s90, %s104
    %p106 = scmp.eq.s32.totalorder %s17, 0
    %p107 = por %p105, %p106
    %s109 = sadd.s32 %s108, 1
    %p112 = scmp.eq.s32.totalorder %s11, 1
    %p113 = scmp.ne.s32.totalorder %s108, %s110
    %p114 = scmp.eq.s32.totalorder %s11, 0
    %p115 = por %p113, %p114
    %p116 = scmp.ne.s32.totalorder %s108, %s110
    %p117 = scmp.eq.s32.totalorder %s16, 1
    %p118 = por %p116, %p117
    %p119 = scmp.ne.s32.totalorder %s110, %s111
    %p120 = scmp.eq.s32.totalorder %s16, 0
    %p121 = por %p119, %p120
    %p122 = scmp.ne.s32.totalorder %s110, %s111
    %p123 = scmp.eq.s32.totalorder %s17, 1
    %p124 = por %p122, %p123
    %p126 = scmp.ne.s32.totalorder %s111, %s125
    %p127 = scmp.eq.s32.totalorder %s17, 0
    %p128 = por %p126, %p127
    %s129 = ssub.s32 %s11, %s18
    %p130 = scmp.eq.s32.totalorder %s129, 0
    %s132 = sadd.s32 %s131, 1
    %s133 = scalar_select %p130, %s131, %s132
    %p136 = pneg %p130
    %p137 = scmp.eq.s32.totalorder %s11, 1
    %p138 = por %p136, %p137
    %p139 = scmp.ne.s32.totalorder %s131, %s134
    %p140 = scmp.eq.s32.totalorder %s11, 0
    %p141 = por %p139, %p140
    %p142 = scmp.ne.s32.totalorder %s131, %s134
    %p143 = scmp.eq.s32.totalorder %s16, 1
    %p144 = por %p142, %p143
    %p145 = scmp.ne.s32.totalorder %s134, %s135
    %p146 = scmp.eq.s32.totalorder %s16, 0
    %p147 = por %p145, %p146
    %p148 = scmp.ne.s32.totalorder %s134, %s135
    %p149 = scmp.eq.s32.totalorder %s17, 1
    %p150 = por %p148, %p149
    %p152 = scmp.ne.s32.totalorder %s135, %s151
    %p153 = scmp.eq.s32.totalorder %s17, 0
    %p154 = por %p152, %p153
    %p155 = scmp.le.s32.totalorder 1, %s11
    %p156 = scmp.lt.s32.totalorder %s11, 3
    %p157 = pnand %p155, %p156
    %p158 = pneg %p157
    // Predicated region
    $region9: #{_forward_core.1} parent=5 // pred_check
      _
    $region10: #{_forward_core.1} parent=5 // pred_check_branch
      %160 = sbr.rel (%p157) target = $region12
    $region11: #{_forward_core.1} parent=5 // pred_region
      %s161 = ssub.s32 %s11, 1
      // Predicated region
      $region13: #{_forward_core.1} parent=11 // pred_check
        %p162 = pneg %p58
      $region14: #{_forward_core.1} parent=11 // pred_check_branch
        %164 = sbr.rel (%p162) target = $region16
      $region15: #{_forward_core.1} parent=11 // pred_region
        _
      $region16: #{_forward_core.1} parent=11 // pred_fallthru
        _
      // Predicated region
      $region17: #{_forward_core.1} parent=11 // pred_check
        %p165 = pneg %p79
      $region18: #{_forward_core.1} parent=11 // pred_check_branch
        %167 = sbr.rel (%p165) target = $region20
      $region19: #{_forward_core.1} parent=11 // pred_region
        _
      $region20: #{_forward_core.1} parent=11 // pred_fallthru
        _
      // Predicated region
      $region21: #{_forward_core.1} parent=11 // pred_check
        %p168 = pneg %p100
      $region22: #{_forward_core.1} parent=11 // pred_check_branch
        %170 = sbr.rel (%p168) target = $region24
      $region23: #{_forward_core.1} parent=11 // pred_region
        _
      $region24: #{_forward_core.1} parent=11 // pred_fallthru
        _
      // Predicated region
      $region25: #{_forward_core.1} parent=11 // pred_check
        %p171 = pneg %p121
      $region26: #{_forward_core.1} parent=11 // pred_check_branch
        %173 = sbr.rel (%p171) target = $region28
      $region27: #{_forward_core.1} parent=11 // pred_region
        _
      $region28: #{_forward_core.1} parent=11 // pred_fallthru
        _
    $region12: #{_forward_core.1} parent=5 // pred_fallthru
      _
    %p174 = scmp.lt.s32.totalorder %s11, 2
    // Predicated region
    $region29: #{_forward_core.1} parent=5 // pred_check
      %p175 = pneg %p174
    $region30: #{_forward_core.1} parent=5 // pred_check_branch
      %177 = sbr.rel (%p175) target = $region32
    $region31: #{_forward_core.1} parent=5 // pred_region
      // Predicated region
      $region33: #{_forward_core.1} parent=31 // pred_check
        %p178 = pneg %p31
      $region34: #{_forward_core.1} parent=31 // pred_check_branch
        %180 = sbr.rel (%p178) target = $region36
      $region35: #{_forward_core.1} parent=31 // pred_region
        %s181 = smul.u32 16, %s11
        %p182 = scmp.lt.s32.totalorder %s181, 31
        %s183 = scalar_select %p182, %s181, 31
        %s184 = smul.addr %s183, 8
        %s185 = scalar_lea.vmem %s0, %s184
        %s186 = smul.u32 16, %s11
      $region36: #{_forward_core.1} parent=31 // pred_fallthru
        _
    $region32: #{_forward_core.1} parent=5 // pred_fallthru
      _
    %p187 = scmp.le.s32.totalorder 1, %s11
    %p188 = scmp.lt.s32.totalorder %s11, 3
    %p189 = pnand %p187, %p188
    %p190 = pneg %p189
    // Predicated region
    $region37: #{_forward_core.1} parent=5 // pred_check
      _
    $region38: #{_forward_core.1} parent=5 // pred_check_branch
      %192 = sbr.rel (%p189) target = $region40
    $region39: #{_forward_core.1} parent=5 // pred_region
      %s193 = ssub.s32 %s11, 1
      %s194 = smul.u32 16, %s16
      %p195 = scmp.lt.s32.totalorder %s194, 31
      %s196 = scalar_select %p195, %s194, 31
      %s197 = smul.addr %s196, 8
      %s198 = scalar_lea.vmem %s0, %s197
      %p199 = pneg %p37
      %p200 = pneg %p34
      %p201 = pneg %p58
      %p202 = pneg %p55
      %p203 = pneg %p79
      %p204 = pneg %p76
      %p205 = pneg %p100
      %p206 = pneg %p97
      %p207 = pneg %p121
      %p208 = pneg %p118
      %p209 = pneg %p147
      %p210 = pneg %p144
      %s211 = smul.u32 16, %s16
      %p212 = scmp.lt.s32.totalorder %s211, 31
      %s213 = scalar_select %p212, %s211, 31
      %s214 = smul.addr %s213, 8
      %s215 = scalar_lea.vmem %s5, %s214
      %s216 = smul.u32 16, %s16
      %p217 = scmp.lt.s32.totalorder %s216, 31
      %s218 = scalar_select %p217, %s216, 31
      %s219 = smul.addr %s218, 8
      %s220 = scalar_lea.vmem %s0, %s219
      %s221 = smul.u32 16, %s16
      %s222 = smul.u32 16, %s16
      %p223 = scmp.lt.s32.totalorder %s222, 31
      %s224 = scalar_select %p223, %s222, 31
      %s225 = smul.addr %s224, 8
      %s226 = scalar_lea.vmem %s5, %s225
      %s227 = smul.u32 16, %s16
      %229 = vst [vmem:[#allocation2] sm:$0xff] 0.0
      %230 = vst [vmem:[#allocation2 + $0x8] sm:$0xff] 0.0
      %231 = vst [vmem:[#allocation2 + $0x10] sm:$0xff] 0.0
      %232 = vst [vmem:[#allocation2 + $0x18] sm:$0xff] 0.0
      %233 = vst [vmem:[#allocation2 + $0x20] sm:$0xff] 0.0
      %234 = vst [vmem:[#allocation2 + $0x28] sm:$0xff] 0.0
      %235 = vst [vmem:[#allocation2 + $0x30] sm:$0xff] 0.0
      %236 = vst [vmem:[#allocation2 + $0x38] sm:$0xff] 0.0
      %237 = vst [vmem:[#allocation2 + $0x40] sm:$0xff] 0.0
      %238 = vst [vmem:[#allocation2 + $0x48] sm:$0xff] 0.0
      %239 = vst [vmem:[#allocation2 + $0x50] sm:$0xff] 0.0
      %240 = vst [vmem:[#allocation2 + $0x58] sm:$0xff] 0.0
      %241 = vst [vmem:[#allocation2 + $0x60] sm:$0xff] 0.0
      %242 = vst [vmem:[#allocation2 + $0x68] sm:$0xff] 0.0
      %243 = vst [vmem:[#allocation2 + $0x70] sm:$0xff] 0.0
      %244 = vst [vmem:[#allocation2 + $0x78] sm:$0xff] 0.0
      %v245 = vld [vmem:[%s220] sm:$0xff]
      %v246 = vld [vmem:[%s220 + $0x8] sm:$0xff]
      %v247 = vld [vmem:[%s220 + $0x10] sm:$0xff]
      %v248 = vld [vmem:[%s220 + $0x18] sm:$0xff]
      %v249 = vld [vmem:[%s220 + $0x20] sm:$0xff]
      %v250 = vld [vmem:[%s220 + $0x28] sm:$0xff]
      %v251 = vld [vmem:[%s220 + $0x30] sm:$0xff]
      %v252 = vld [vmem:[%s220 + $0x38] sm:$0xff]
      %v253 = vld [vmem:[%s220 + $0x40] sm:$0xff]
      %v254 = vld [vmem:[%s220 + $0x48] sm:$0xff]
      %v255 = vld [vmem:[%s220 + $0x50] sm:$0xff]
      %v256 = vld [vmem:[%s220 + $0x58] sm:$0xff]
      %v257 = vld [vmem:[%s220 + $0x60] sm:$0xff]
      %v258 = vld [vmem:[%s220 + $0x68] sm:$0xff]
      %v259 = vld [vmem:[%s220 + $0x70] sm:$0xff]
      %v260 = vld [vmem:[%s220 + $0x78] sm:$0xff]
      %vm261 = vcmask 89088
      %262 = vst.msk [vmem:[#allocation2] sm:$0xff] %vm261, %v245
      %263 = vst.msk [vmem:[#allocation2 + $0x8] sm:$0xff] %vm261, %v246
      %264 = vst.msk [vmem:[#allocation2 + $0x10] sm:$0xff] %vm261, %v247
      %265 = vst.msk [vmem:[#allocation2 + $0x18] sm:$0xff] %vm261, %v248
      %266 = vst.msk [vmem:[#allocation2 + $0x20] sm:$0xff] %vm261, %v249
      %267 = vst.msk [vmem:[#allocation2 + $0x28] sm:$0xff] %vm261, %v250
      %268 = vst.msk [vmem:[#allocation2 + $0x30] sm:$0xff] %vm261, %v251
      %269 = vst.msk [vmem:[#allocation2 + $0x38] sm:$0xff] %vm261, %v252
      %270 = vst.msk [vmem:[#allocation2 + $0x40] sm:$0xff] %vm261, %v253
      %271 = vst.msk [vmem:[#allocation2 + $0x48] sm:$0xff] %vm261, %v254
      %272 = vst.msk [vmem:[#allocation2 + $0x50] sm:$0xff] %vm261, %v255
      %273 = vst.msk [vmem:[#allocation2 + $0x58] sm:$0xff] %vm261, %v256
      %274 = vst.msk [vmem:[#allocation2 + $0x60] sm:$0xff] %vm261, %v257
      %275 = vst.msk [vmem:[#allocation2 + $0x68] sm:$0xff] %vm261, %v258
      %276 = vst.msk [vmem:[#allocation2 + $0x70] sm:$0xff] %vm261, %v259
      %277 = vst.msk [vmem:[#allocation2 + $0x78] sm:$0xff] %vm261, %v260
      %v278 = vld [vmem:[#allocation2] sm:$0xff]
      %v279 = vld [vmem:[#allocation2 + $0x8] sm:$0xff]
      %v280 = vld [vmem:[#allocation2 + $0x10] sm:$0xff]
      %v281 = vld [vmem:[#allocation2 + $0x18] sm:$0xff]
      %v282 = vld [vmem:[#allocation2 + $0x20] sm:$0xff]
      %v283 = vld [vmem:[#allocation2 + $0x28] sm:$0xff]
      %v284 = vld [vmem:[#allocation2 + $0x30] sm:$0xff]
      %v285 = vld [vmem:[#allocation2 + $0x38] sm:$0xff]
      %v286 = vld [vmem:[#allocation2 + $0x40] sm:$0xff]
      %v287 = vld [vmem:[#allocation2 + $0x48] sm:$0xff]
      %v288 = vld [vmem:[#allocation2 + $0x50] sm:$0xff]
      %v289 = vld [vmem:[#allocation2 + $0x58] sm:$0xff]
      %v290 = vld [vmem:[#allocation2 + $0x60] sm:$0xff]
      %v291 = vld [vmem:[#allocation2 + $0x68] sm:$0xff]
      %v292 = vld [vmem:[#allocation2 + $0x70] sm:$0xff]
      %v293 = vld [vmem:[#allocation2 + $0x78] sm:$0xff]
      %v294 = vpack.c.bf16 %v279, %v278
      %v295 = vpack.c.bf16 %v281, %v280
      %v296 = vpack.c.bf16 %v283, %v282
      %v297 = vpack.c.bf16 %v285, %v284
      %v298 = vpack.c.bf16 %v287, %v286
      %v299 = vpack.c.bf16 %v289, %v288
      %v300 = vpack.c.bf16 %v291, %v290
      %v301 = vpack.c.bf16 %v293, %v292
      %v302 = vld [vmem:[%s1] sm:$0xf]
      %v303 = vld [vmem:[%s1 + $0x4] sm:$0xf]
      %v304 = vld [vmem:[%s1 + $0x8] sm:$0xf]
      %v305 = vld [vmem:[%s1 + $0xc] sm:$0xf]
      %v306 = vld [vmem:[%s1 + $0x10] sm:$0xf]
      %v307 = vld [vmem:[%s1 + $0x14] sm:$0xf]
      %v308 = vld [vmem:[%s1 + $0x18] sm:$0xf]
      %v309 = vld [vmem:[%s1 + $0x1c] sm:$0xf]
      %v310 = vld [vmem:[%s1 + $0x20] sm:$0xf]
      %v311 = vld [vmem:[%s1 + $0x24] sm:$0xf]
      %v312 = vld [vmem:[%s1 + $0x28] sm:$0xf]
      %v313 = vld [vmem:[%s1 + $0x2c] sm:$0xf]
      %v314 = vld [vmem:[%s1 + $0x30] sm:$0xf]
      %v315 = vld [vmem:[%s1 + $0x34] sm:$0xf]
      %v316 = vld [vmem:[%s1 + $0x38] sm:$0xf]
      %v317 = vld [vmem:[%s1 + $0x3c] sm:$0xf]
      %v318 = vld [vmem:[%s2] sm:$0x1]
      %v320 = vlaneseq
      %v321 = vshrl.u32 %v320, 7
      %v322 = vsub.s32 0, %v321
      %v323 = vrot.slane %v318, %v322
      %v341 = vunpack.c.l.b16 %v302
      %v342 = vunpack.c.l.b16 %v303
      %v343 = vunpack.c.l.b16 %v304
      %v344 = vunpack.c.l.b16 %v305
      %v345 = vunpack.c.l.b16 %v306
      %v346 = vunpack.c.l.b16 %v307
      %v347 = vunpack.c.l.b16 %v308
      %v348 = vunpack.c.l.b16 %v309
      %v349 = vunpack.c.l.b16 %v310
      %v350 = vunpack.c.l.b16 %v311
      %v351 = vunpack.c.l.b16 %v312
      %v352 = vunpack.c.l.b16 %v313
      %v353 = vunpack.c.l.b16 %v314
      %v354 = vunpack.c.l.b16 %v315
      %v355 = vunpack.c.l.b16 %v316
      %v356 = vunpack.c.l.b16 %v317
      %v357 = vpack.c.b16 %v342, %v341
      %v358 = vpack.c.b16 %v344, %v343
      %v359 = vpack.c.b16 %v346, %v345
      %v360 = vpack.c.b16 %v348, %v347
      %v361 = vpack.c.b16 %v350, %v349
      %v362 = vpack.c.b16 %v352, %v351
      %v363 = vpack.c.b16 %v354, %v353
      %v364 = vpack.c.b16 %v356, %v355
      %373 = vmatprep.subr.bf16.mxu0 0
      %374 = vmatpush1.bf16.msra.mxu0 %v357
      %375 = vmatprep.subr.bf16.mxu0 0
      %376 = vmatpush1.bf16.msra.mxu0 %v358
      %377 = vmatprep.subr.bf16.mxu0 0
      %378 = vmatpush1.bf16.msra.mxu0 %v359
      %379 = vmatprep.subr.bf16.mxu0 0
      %380 = vmatpush1.bf16.msra.mxu0 %v360
      %381 = vmatprep.subr.bf16.mxu0 0
      %382 = vmatpush1.bf16.msra.mxu0 %v361
      %383 = vmatprep.subr.bf16.mxu0 0
      %384 = vmatpush1.bf16.msra.mxu0 %v362
      %385 = vmatprep.subr.bf16.mxu0 0
      %386 = vmatpush1.bf16.msra.mxu0 %v363
      %387 = vmatprep.subr.bf16.mxu0 0
      %388 = vmatpush1.bf16.msra.mxu0 %v364
      %389 = vmatprep.subr.bf16.mxu0 0
      %390 = vmatpush1.bf16.msra.mxu0 0
      %391 = vmatprep.subr.bf16.mxu0 0
      %392 = vmatpush1.bf16.msra.mxu0 0
      %393 = vmatprep.subr.bf16.mxu0 0
      %394 = vmatpush1.bf16.msra.mxu0 0
      %395 = vmatprep.subr.bf16.mxu0 0
      %396 = vmatpush1.bf16.msra.mxu0 0
      %397 = vmatprep.subr.bf16.mxu0 0
      %398 = vmatpush1.bf16.msra.mxu0 0
      %399 = vmatprep.subr.bf16.mxu0 0
      %400 = vmatpush1.bf16.msra.mxu0 0
      %401 = vmatprep.subr.bf16.mxu0 0
      %402 = vmatpush1.bf16.msra.mxu0 0
      %403 = vmatprep.subr.bf16.mxu0 0
      %404 = vmatpush1.bf16.msra.mxu0 0
      %405 = vmatprep.mubr.bf16.mxu0 0
      %406 = vmatmul.mubr.bf16.gmra.mrb[0].mxu0 %v294
      %v407 = vpop.f32.mrb[0].mxu0
      %v408 = vadd.f32 %v323, %v407
      %v409 = vpop.f32.mrb[0].mxu0
      %v410 = vpop.f32.mrb[0].mxu0
      %v411 = vadd.f32 %v323, %v410
      %v412 = vpop.f32.mrb[0].mxu0
      %413 = vmatprep.mubr.bf16.mxu0 0
      %414 = vmatmul.mubr.bf16.gmra.mrb[0].mxu0 %v295
      %v415 = vpop.f32.mrb[0].mxu0
      %v416 = vadd.f32 %v323, %v415
      %v417 = vpop.f32.mrb[0].mxu0
      %v418 = vpop.f32.mrb[0].mxu0
      %v419 = vadd.f32 %v323, %v418
      %v420 = vpop.f32.mrb[0].mxu0
      %421 = vmatprep.mubr.bf16.mxu0 0
      %422 = vmatmul.mubr.bf16.gmra.mrb[0].mxu0 %v296
      %v423 = vpop.f32.mrb[0].mxu0
      %v424 = vadd.f32 %v323, %v423
      %v425 = vpop.f32.mrb[0].mxu0
      %v426 = vpop.f32.mrb[0].mxu0
      %v427 = vadd.f32 %v323, %v426
      %v428 = vpop.f32.mrb[0].mxu0
      %429 = vmatprep.mubr.bf16.mxu0 0
      %430 = vmatmul.mubr.bf16.gmra.mrb[0].mxu0 %v297
      %v431 = vpop.f32.mrb[0].mxu0
      %v432 = vadd.f32 %v323, %v431
      %v433 = vpop.f32.mrb[0].mxu0
      %v434 = vpop.f32.mrb[0].mxu0
      %v435 = vadd.f32 %v323, %v434
      %v436 = vpop.f32.mrb[0].mxu0
      %437 = vmatprep.mubr.bf16.mxu0 0
      %438 = vmatmul.mubr.bf16.gmra.mrb[0].mxu0 %v298
      %v439 = vpop.f32.mrb[0].mxu0
      %v440 = vadd.f32 %v323, %v439
      %v441 = vpop.f32.mrb[0].mxu0
      %v442 = vpop.f32.mrb[0].mxu0
      %v443 = vadd.f32 %v323, %v442
      %v444 = vpop.f32.mrb[0].mxu0
      %445 = vmatprep.mubr.bf16.mxu0 0
      %446 = vmatmul.mubr.bf16.gmra.mrb[0].mxu0 %v299
      %v447 = vpop.f32.mrb[0].mxu0
      %v448 = vadd.f32 %v323, %v447
      %v449 = vpop.f32.mrb[0].mxu0
      %v450 = vpop.f32.mrb[0].mxu0
      %v451 = vadd.f32 %v323, %v450
      %v452 = vpop.f32.mrb[0].mxu0
      %453 = vmatprep.mubr.bf16.mxu0 0
      %454 = vmatmul.mubr.bf16.gmra.mrb[0].mxu0 %v300
      %v455 = vpop.f32.mrb[0].mxu0
      %v456 = vadd.f32 %v323, %v455
      %v457 = vpop.f32.mrb[0].mxu0
      %v458 = vpop.f32.mrb[0].mxu0
      %v459 = vadd.f32 %v323, %v458
      %v460 = vpop.f32.mrb[0].mxu0
      %461 = vmatprep.mubr.bf16.mxu0 0
      %462 = vmatmul.mubr.bf16.gmra.mrb[0].mxu0 %v301
      %v463 = vpop.f32.mrb[0].mxu0
      %v464 = vadd.f32 %v323, %v463
      %v465 = vpop.f32.mrb[0].mxu0
      %v466 = vpop.f32.mrb[0].mxu0
      %v467 = vadd.f32 %v323, %v466
      %v468 = vpop.f32.mrb[0].mxu0
      %469 = vdwg.mxu0
      %v470 = vmax.f32 %v408, 0.0
      %v471 = vmax.f32 %v411, 0.0
      %v472 = vmax.f32 %v416, 0.0
      %v473 = vmax.f32 %v419, 0.0
      %v474 = vmax.f32 %v424, 0.0
      %v475 = vmax.f32 %v427, 0.0
      %v476 = vmax.f32 %v432, 0.0
      %v477 = vmax.f32 %v435, 0.0
      %v478 = vmax.f32 %v440, 0.0
      %v479 = vmax.f32 %v443, 0.0
      %v480 = vmax.f32 %v448, 0.0
      %v481 = vmax.f32 %v451, 0.0
      %v482 = vmax.f32 %v456, 0.0
      %v483 = vmax.f32 %v459, 0.0
      %v484 = vmax.f32 %v464, 0.0
      %v485 = vmax.f32 %v467, 0.0
      %v486 = vpack.c.bf16 %v471, %v470
      %v487 = vpack.c.bf16 %v473, %v472
      %v488 = vpack.c.bf16 %v475, %v474
      %v489 = vpack.c.bf16 %v477, %v476
      %v490 = vpack.c.bf16 %v479, %v478
      %v491 = vpack.c.bf16 %v481, %v480
      %v492 = vpack.c.bf16 %v483, %v482
      %v493 = vpack.c.bf16 %v485, %v484
      %v494 = vld [vmem:[%s3] sm:$0xf]
      %v495 = vld [vmem:[%s3 + $0x4] sm:$0xf]
      %v496 = vld [vmem:[%s3 + $0x8] sm:$0xf]
      %v497 = vld [vmem:[%s3 + $0xc] sm:$0xf]
      %v498 = vld [vmem:[%s3 + $0x10] sm:$0xf]
      %v499 = vld [vmem:[%s3 + $0x14] sm:$0xf]
      %v500 = vld [vmem:[%s3 + $0x18] sm:$0xf]
      %v501 = vld [vmem:[%s3 + $0x1c] sm:$0xf]
      %v502 = vld [vmem:[%s3 + $0x20] sm:$0xf]
      %v503 = vld [vmem:[%s3 + $0x24] sm:$0xf]
      %v504 = vld [vmem:[%s3 + $0x28] sm:$0xf]
      %v505 = vld [vmem:[%s3 + $0x2c] sm:$0xf]
      %v506 = vld [vmem:[%s3 + $0x30] sm:$0xf]
      %v507 = vld [vmem:[%s3 + $0x34] sm:$0xf]
      %v508 = vld [vmem:[%s3 + $0x38] sm:$0xf]
      %v509 = vld [vmem:[%s3 + $0x3c] sm:$0xf]
      %v510 = vld [vmem:[%s4] sm:$0x1]
      %v512 = vlaneseq
      %v513 = vshrl.u32 %v512, 7
      %v514 = vsub.s32 0, %v513
      %v515 = vrot.slane %v510, %v514
      %v533 = vunpack.c.l.b16 %v494
      %v534 = vunpack.c.l.b16 %v495
      %v535 = vunpack.c.l.b16 %v496
      %v536 = vunpack.c.l.b16 %v497
      %v537 = vunpack.c.l.b16 %v498
      %v538 = vunpack.c.l.b16 %v499
      %v539 = vunpack.c.l.b16 %v500
      %v540 = vunpack.c.l.b16 %v501
      %v541 = vunpack.c.l.b16 %v502
      %v542 = vunpack.c.l.b16 %v503
      %v543 = vunpack.c.l.b16 %v504
      %v544 = vunpack.c.l.b16 %v505
      %v545 = vunpack.c.l.b16 %v506
      %v546 = vunpack.c.l.b16 %v507
      %v547 = vunpack.c.l.b16 %v508
      %v548 = vunpack.c.l.b16 %v509
      %v549 = vpack.c.b16 %v534, %v533
      %v550 = vpack.c.b16 %v536, %v535
      %v551 = vpack.c.b16 %v538, %v537
      %v552 = vpack.c.b16 %v540, %v539
      %v553 = vpack.c.b16 %v542, %v541
      %v554 = vpack.c.b16 %v544, %v543
      %v555 = vpack.c.b16 %v546, %v545
      %v556 = vpack.c.b16 %v548, %v547
      %565 = vmatprep.subr.bf16.mxu0 0
      %566 = vmatpush1.bf16.msra.mxu0 %v549
      %567 = vmatprep.subr.bf16.mxu0 0
      %568 = vmatpush1.bf16.msra.mxu0 %v550
      %569 = vmatprep.subr.bf16.mxu0 0
      %570 = vmatpush1.bf16.msra.mxu0 %v551
      %571 = vmatprep.subr.bf16.mxu0 0
      %572 = vmatpush1.bf16.msra.mxu0 %v552
      %573 = vmatprep.subr.bf16.mxu0 0
      %574 = vmatpush1.bf16.msra.mxu0 %v553
      %575 = vmatprep.subr.bf16.mxu0 0
      %576 = vmatpush1.bf16.msra.mxu0 %v554
      %577 = vmatprep.subr.bf16.mxu0 0
      %578 = vmatpush1.bf16.msra.mxu0 %v555
      %579 = vmatprep.subr.bf16.mxu0 0
      %580 = vmatpush1.bf16.msra.mxu0 %v556
      %581 = vmatprep.subr.bf16.mxu0 0
      %582 = vmatpush1.bf16.msra.mxu0 0
      %583 = vmatprep.subr.bf16.mxu0 0
      %584 = vmatpush1.bf16.msra.mxu0 0
      %585 = vmatprep.subr.bf16.mxu0 0
      %586 = vmatpush1.bf16.msra.mxu0 0
      %587 = vmatprep.subr.bf16.mxu0 0
      %588 = vmatpush1.bf16.msra.mxu0 0
      %589 = vmatprep.subr.bf16.mxu0 0
      %590 = vmatpush1.bf16.msra.mxu0 0
      %591 = vmatprep.subr.bf16.mxu0 0
      %592 = vmatpush1.bf16.msra.mxu0 0
      %593 = vmatprep.subr.bf16.mxu0 0
      %594 = vmatpush1.bf16.msra.mxu0 0
      %595 = vmatprep.subr.bf16.mxu0 0
      %596 = vmatpush1.bf16.msra.mxu0 0
      %597 = vmatprep.mubr.bf16.mxu0 0
      %598 = vmatmul.mubr.bf16.gmra.mrb[0].mxu0 %v486
      %v599 = vpop.f32.mrb[0].mxu0
      %v600 = vadd.f32 %v515, %v599
      %v601 = vpop.f32.mrb[0].mxu0
      %v602 = vpop.f32.mrb[0].mxu0
      %v603 = vadd.f32 %v515, %v602
      %v604 = vpop.f32.mrb[0].mxu0
      %605 = vmatprep.mubr.bf16.mxu0 0
      %606 = vmatmul.mubr.bf16.gmra.mrb[0].mxu0 %v487
      %v607 = vpop.f32.mrb[0].mxu0
      %v608 = vadd.f32 %v515, %v607
      %v609 = vpop.f32.mrb[0].mxu0
      %v610 = vpop.f32.mrb[0].mxu0
      %v611 = vadd.f32 %v515, %v610
      %v612 = vpop.f32.mrb[0].mxu0
      %613 = vmatprep.mubr.bf16.mxu0 0
      %614 = vmatmul.mubr.bf16.gmra.mrb[0].mxu0 %v488
      %v615 = vpop.f32.mrb[0].mxu0
      %v616 = vadd.f32 %v515, %v615
      %v617 = vpop.f32.mrb[0].mxu0
      %v618 = vpop.f32.mrb[0].mxu0
      %v619 = vadd.f32 %v515, %v618
      %v620 = vpop.f32.mrb[0].mxu0
      %621 = vmatprep.mubr.bf16.mxu0 0
      %622 = vmatmul.mubr.bf16.gmra.mrb[0].mxu0 %v489
      %v623 = vpop.f32.mrb[0].mxu0
      %v624 = vadd.f32 %v515, %v623
      %v625 = vpop.f32.mrb[0].mxu0
      %v626 = vpop.f32.mrb[0].mxu0
      %v627 = vadd.f32 %v515, %v626
      %v628 = vpop.f32.mrb[0].mxu0
      %629 = vmatprep.mubr.bf16.mxu0 0
      %630 = vmatmul.mubr.bf16.gmra.mrb[0].mxu0 %v490
      %v631 = vpop.f32.mrb[0].mxu0
      %v632 = vadd.f32 %v515, %v631
      %v633 = vpop.f32.mrb[0].mxu0
      %v634 = vpop.f32.mrb[0].mxu0
      %v635 = vadd.f32 %v515, %v634
      %v636 = vpop.f32.mrb[0].mxu0
      %637 = vmatprep.mubr.bf16.mxu0 0
      %638 = vmatmul.mubr.bf16.gmra.mrb[0].mxu0 %v491
      %v639 = vpop.f32.mrb[0].mxu0
      %v640 = vadd.f32 %v515, %v639
      %v641 = vpop.f32.mrb[0].mxu0
      %v642 = vpop.f32.mrb[0].mxu0
      %v643 = vadd.f32 %v515, %v642
      %v644 = vpop.f32.mrb[0].mxu0
      %645 = vmatprep.mubr.bf16.mxu0 0
      %646 = vmatmul.mubr.bf16.gmra.mrb[0].mxu0 %v492
      %v647 = vpop.f32.mrb[0].mxu0
      %v648 = vadd.f32 %v515, %v647
      %v649 = vpop.f32.mrb[0].mxu0
      %v650 = vpop.f32.mrb[0].mxu0
      %v651 = vadd.f32 %v515, %v650
      %v652 = vpop.f32.mrb[0].mxu0
      %653 = vmatprep.mubr.bf16.mxu0 0
      %654 = vmatmul.mubr.bf16.gmra.mrb[0].mxu0 %v493
      %v655 = vpop.f32.mrb[0].mxu0
      %v656 = vadd.f32 %v515, %v655
      %v657 = vpop.f32.mrb[0].mxu0
      %v658 = vpop.f32.mrb[0].mxu0
      %v659 = vadd.f32 %v515, %v658
      %v660 = vpop.f32.mrb[0].mxu0
      %661 = vdwg.mxu0
      %662 = vst [vmem:[%s226] sm:$0xff] %v600
      %663 = vst [vmem:[%s226 + $0x8] sm:$0xff] %v603
      %664 = vst [vmem:[%s226 + $0x10] sm:$0xff] %v608
      %665 = vst [vmem:[%s226 + $0x18] sm:$0xff] %v611
      %666 = vst [vmem:[%s226 + $0x20] sm:$0xff] %v616
      %667 = vst [vmem:[%s226 + $0x28] sm:$0xff] %v619
      %668 = vst [vmem:[%s226 + $0x30] sm:$0xff] %v624
      %669 = vst [vmem:[%s226 + $0x38] sm:$0xff] %v627
      %670 = vst [vmem:[%s226 + $0x40] sm:$0xff] %v632
      %671 = vst [vmem:[%s226 + $0x48] sm:$0xff] %v635
      %672 = vst [vmem:[%s226 + $0x50] sm:$0xff] %v640
      %673 = vst [vmem:[%s226 + $0x58] sm:$0xff] %v643
      %674 = vst [vmem:[%s226 + $0x60] sm:$0xff] %v648
      %675 = vst [vmem:[%s226 + $0x68] sm:$0xff] %v651
      %676 = vst [vmem:[%s226 + $0x70] sm:$0xff] %v656
      %677 = vst [vmem:[%s226 + $0x78] sm:$0xff] %v659
      %s678 = smul.u32 16, %s16
      %p679 = scmp.lt.s32.totalorder %s678, 31
      %s680 = scalar_select %p679, %s678, 31
      %s681 = smul.addr %s680, 8
      %s682 = scalar_lea.vmem %s5, %s681
      // Predicated region
      $region41: #{_forward_core.1} parent=39 // pred_check
        %p683 = pneg %p144
      $region42: #{_forward_core.1} parent=39 // pred_check_branch
        %685 = sbr.rel (%p683) target = $region44
      $region43: #{_forward_core.1} parent=39 // pred_region
        %s686 = smul.u32 16, %s16
      $region44: #{_forward_core.1} parent=39 // pred_fallthru
        _
    $region40: #{_forward_core.1} parent=5 // pred_fallthru
      _
    %p687 = scmp.le.s32.totalorder 2, %s11
    // Predicated region
    $region45: #{_forward_core.1} parent=5 // pred_check
      %p688 = pneg %p687
    $region46: #{_forward_core.1} parent=5 // pred_check_branch
      %690 = sbr.rel (%p688) target = $region48
    $region47: #{_forward_core.1} parent=5 // pred_region
      %s691 = ssub.s32 %s11, 2
      // Predicated region
      $region49: #{_forward_core.1} parent=47 // pred_check
        %p692 = pneg %p150
      $region50: #{_forward_core.1} parent=47 // pred_check_branch
        %694 = sbr.rel (%p692) target = $region52
      $region51: #{_forward_core.1} parent=47 // pred_region
        %s695 = smul.u32 16, %s17
        %p696 = scmp.lt.s32.totalorder %s695, 31
        %s697 = scalar_select %p696, %s695, 31
        %s698 = smul.addr %s697, 8
        %s699 = scalar_lea.vmem %s5, %s698
      $region52: #{_forward_core.1} parent=47 // pred_fallthru
        _
    $region48: #{_forward_core.1} parent=5 // pred_fallthru
      _
  $region6: #{_forward_core.1} parent=0 // loop_footer
    %s15 = sadd.s32 1, %s11
  $region7: #{_forward_core.1} parent=0 // loop_footer_branch
    %10 = sbr.rel target = $region3
  $region8: #{_forward_core.1} parent=0 // loop_exit
    _

</llo_original>
